<compile_context>
chip_gen: v7x
topology: tpu7x:2x2x1
jax: 0.10.0
libtpu: 0.0.40
codegen_flags: <defaults>
</compile_context>

<pallas_src>
import jax
import jax.numpy as jnp
from jax.experimental import pallas as pl
from jax.experimental.pallas import tpu as pltpu

IN_SIZE = 8          # number of Titanic features (len(x) in the reference)
HIDDEN_SIZE = 32
OUT_SIZE = 2

# Exactly 2 grid steps: enough to use both TensorCores on v7x (via "parallel"
# dimension semantics); on single-TC v5e/v6e the extra step is ~0.35 us.
NUM_STEPS = 2
ROW_ALIGN = 8 * NUM_STEPS   # rows padded to a multiple of (sublane * steps)


def mlp_kernel(x_ref, w1_ref, b1_ref, w2_ref, b2_ref, o_ref):
    # x_ref: (TM, IN)  w1: (IN, H)  b1: (1, H)  w2: (H, OUT)  b2: (1, OUT)
    x = x_ref[...]                                                     # f32
    h = jnp.dot(x, w1_ref[...], preferred_element_type=jnp.float32)   # (TM, H)   MXU
    h = jnp.maximum(h + b1_ref[...], 0.0)                             # bias+ReLU VPU
    y = jnp.dot(h, w2_ref[...], preferred_element_type=jnp.float32)   # (TM, OUT) MXU
    o_ref[...] = (y + b2_ref[...]).astype(o_ref.dtype)                # (TM, 2) store


def _mlp_forward(x, w1, b1, w2, b2):
    """x: (B, IN) f32.  w1: (IN, H), b1: (H,), w2: (H, OUT), b2: (OUT,).

    Weights are stored as [in, out] (pre-transposed vs. PyTorch Linear), so
    the math matches torch's  x @ weight.T + bias  exactly.
    """
    B = x.shape[0]

    # Pad batch rows only to the sublane/step alignment (e.g. 891 -> 896).
    b_pad = ((B + ROW_ALIGN - 1) // ROW_ALIGN) * ROW_ALIGN
    if b_pad != B:
        x = jnp.pad(x, ((0, b_pad - B), (0, 0)))

    tm = b_pad // NUM_STEPS                     # rows per grid step
    b1r = b1.reshape(1, HIDDEN_SIZE)            # folded by jit
    b2r = b2.reshape(1, OUT_SIZE)

    out = pl.pallas_call(
        mlp_kernel,
        out_shape=jax.ShapeDtypeStruct((b_pad, OUT_SIZE), jnp.float32),
        grid=(NUM_STEPS,),
        in_specs=[
            # activations stream through the (tiny) grid
            pl.BlockSpec((tm, IN_SIZE), lambda i: (i, 0)),
            # parameters: constant block index -> VMEM-resident across steps
            pl.BlockSpec((IN_SIZE, HIDDEN_SIZE), lambda i: (0, 0)),
            pl.BlockSpec((1, HIDDEN_SIZE), lambda i: (0, 0)),
            pl.BlockSpec((HIDDEN_SIZE, OUT_SIZE), lambda i: (0, 0)),
            pl.BlockSpec((1, OUT_SIZE), lambda i: (0, 0)),
        ],
        out_specs=pl.BlockSpec((tm, OUT_SIZE), lambda i: (i, 0)),
        compiler_params=pltpu.CompilerParams(
            dimension_semantics=("parallel",),
        ),
    )(x, w1, b1r, w2, b2r)

    # strip the (few) padded batch rows; output width is already OUT_SIZE
    return out[:B] if b_pad != B else out


mlp_forward = jax.jit(_mlp_forward)


def mlp_reference(x, w1, b1, w2, b2):
    h = jnp.maximum(x @ w1 + b1, 0.0)
    return h @ w2 + b2


if __name__ == "__main__":
    key = jax.random.PRNGKey(0)
    kx, kw1, kb1, kw2, kb2 = jax.random.split(key, 5)

    BATCH = 891  # Titanic-sized batch; exercises row padding (891 -> 896)

    x = jax.random.normal(kx, (BATCH, IN_SIZE), dtype=jnp.float32)
    w1 = jax.random.normal(kw1, (IN_SIZE, HIDDEN_SIZE), dtype=jnp.float32) * 0.1
    b1 = jax.random.normal(kb1, (HIDDEN_SIZE,), dtype=jnp.float32) * 0.1
    w2 = jax.random.normal(kw2, (HIDDEN_SIZE, OUT_SIZE), dtype=jnp.float32) * 0.1
    b2 = jax.random.normal(kb2, (OUT_SIZE,), dtype=jnp.float32) * 0.1

    out = mlp_forward(x, w1, b1, w2, b2)
    out = jax.block_until_ready(out)

    ref = mlp_reference(x, w1, b1, w2, b2)
    assert out.shape == (BATCH, OUT_SIZE)
    assert jnp.allclose(out, ref, atol=1e-5, rtol=1e-5)

    print("KERNEL_OK")
</pallas_src>

<mosaic_0001>
module attributes {stable_mosaic.version = 11 : i64} {
  func.func @mlp_kernel(%arg0: i32, %arg1: memref<448x8xf32, #tpu.memory_space<vmem>>, %arg2: memref<8x32xf32, #tpu.memory_space<vmem>>, %arg3: memref<1x32xf32, #tpu.memory_space<vmem>>, %arg4: memref<32x2xf32, #tpu.memory_space<vmem>>, %arg5: memref<1x2xf32, #tpu.memory_space<vmem>>, %arg6: memref<448x2xf32, #tpu.memory_space<vmem>>) attributes {dimension_semantics = [#tpu.dimension_semantics<parallel>], iteration_bounds = array<i64: 2>, scalar_prefetch = 0 : i64, scratch_operands = 0 : i64, tpu.core_type = #tpu.core_type<tc>, window_params = [{transform_indices = @transform_0, window_bounds = array<i64: 448, 8>}, {pipeline_mode = #tpu.pipeline_mode<synchronous>, transform_indices = @transform_1, window_bounds = array<i64: 8, 32>}, {pipeline_mode = #tpu.pipeline_mode<synchronous>, transform_indices = @transform_2, window_bounds = array<i64: 1, 32>}, {pipeline_mode = #tpu.pipeline_mode<synchronous>, transform_indices = @transform_3, window_bounds = array<i64: 32, 2>}, {pipeline_mode = #tpu.pipeline_mode<synchronous>, transform_indices = @transform_4, window_bounds = array<i64: 1, 2>}, {transform_indices = @transform_5, window_bounds = array<i64: 448, 2>}]} {
    %c0 = arith.constant 0 : index
    %c0_0 = arith.constant 0 : index
    %0 = vector.load %arg1[%c0, %c0_0] : memref<448x8xf32, #tpu.memory_space<vmem>>, vector<448x8xf32>
    %c0_1 = arith.constant 0 : index
    %c0_2 = arith.constant 0 : index
    %1 = vector.load %arg2[%c0_1, %c0_2] : memref<8x32xf32, #tpu.memory_space<vmem>>, vector<8x32xf32>
    %cst = arith.constant dense<0.000000e+00> : vector<448x32xf32>
    %2 = tpu.matmul %0, %1, %cst {dimension_numbers = #tpu.dot_dimension_numbers<[1], [0], [0], [1], [0, 0, 1, 1], [], []>} : vector<448x8xf32>, vector<8x32xf32>, vector<448x32xf32> -> vector<448x32xf32>
    %c0_3 = arith.constant 0 : index
    %c0_4 = arith.constant 0 : index
    %3 = vector.load %arg3[%c0_3, %c0_4] : memref<1x32xf32, #tpu.memory_space<vmem>>, vector<1x32xf32>
    %4 = vector.broadcast %3 : vector<1x32xf32> to vector<448x32xf32>
    %5 = arith.addf %2, %4 : vector<448x32xf32>
    %cst_5 = arith.constant 0.000000e+00 : f32
    %6 = vector.broadcast %cst_5 : f32 to vector<448x32xf32>
    %7 = arith.maximumf %5, %6 : vector<448x32xf32>
    %c0_6 = arith.constant 0 : index
    %c0_7 = arith.constant 0 : index
    %8 = vector.load %arg4[%c0_6, %c0_7] : memref<32x2xf32, #tpu.memory_space<vmem>>, vector<32x2xf32>
    %cst_8 = arith.constant dense<0.000000e+00> : vector<448x2xf32>
    %9 = tpu.matmul %7, %8, %cst_8 {dimension_numbers = #tpu.dot_dimension_numbers<[1], [0], [0], [1], [0, 0, 1, 1], [], []>} : vector<448x32xf32>, vector<32x2xf32>, vector<448x2xf32> -> vector<448x2xf32>
    %c0_9 = arith.constant 0 : index
    %c0_10 = arith.constant 0 : index
    %10 = vector.load %arg5[%c0_9, %c0_10] : memref<1x2xf32, #tpu.memory_space<vmem>>, vector<1x2xf32>
    %11 = vector.broadcast %10 : vector<1x2xf32> to vector<448x2xf32>
    %12 = arith.addf %9, %11 : vector<448x2xf32>
    %c0_11 = arith.constant 0 : index
    %c0_12 = arith.constant 0 : index
    %13 = vector.load %arg6[%c0_11, %c0_12] : memref<448x2xf32, #tpu.memory_space<vmem>>, vector<448x2xf32>
    tpu.vector_store %arg6[%c0_11, %c0_12], %12 {strides = array<i32>} : memref<448x2xf32, #tpu.memory_space<vmem>>, vector<448x2xf32>,
    return
  }
  func.func @transform_0(%arg0: i32) -> (i32, i32) {
    %c0_i32 = arith.constant 0 : i32
    %c0_i32_0 = arith.constant 0 : i32
    return %arg0, %c0_i32 : i32, i32
  }
  func.func @transform_1(%arg0: i32) -> (i32, i32) {
    %c0_i32 = arith.constant 0 : i32
    %c0_i32_0 = arith.constant 0 : i32
    %c0_i32_1 = arith.constant 0 : i32
    return %c0_i32, %c0_i32_0 : i32, i32
  }
  func.func @transform_2(%arg0: i32) -> (i32, i32) {
    %c0_i32 = arith.constant 0 : i32
    %c0_i32_0 = arith.constant 0 : i32
    %c0_i32_1 = arith.constant 0 : i32
    return %c0_i32, %c0_i32_0 : i32, i32
  }
  func.func @transform_3(%arg0: i32) -> (i32, i32) {
    %c0_i32 = arith.constant 0 : i32
    %c0_i32_0 = arith.constant 0 : i32
    %c0_i32_1 = arith.constant 0 : i32
    return %c0_i32, %c0_i32_0 : i32, i32
  }
  func.func @transform_4(%arg0: i32) -> (i32, i32) {
    %c0_i32 = arith.constant 0 : i32
    %c0_i32_0 = arith.constant 0 : i32
    %c0_i32_1 = arith.constant 0 : i32
    return %c0_i32, %c0_i32_0 : i32, i32
  }
  func.func @transform_5(%arg0: i32) -> (i32, i32) {
    %c0_i32 = arith.constant 0 : i32
    %c0_i32_0 = arith.constant 0 : i32
    return %arg0, %c0_i32 : i32, i32
  }
}

</mosaic_0001>

<llo_original>
// kernel: _mlp_forward.1
$region0: #{_mlp_forward.1}
  #allocation0 [shape = 'u32[]', space=smem, size = 0x4, offset = 0x4, fixed_abs, tag = 'smem constant byte address 0x4 - core index']
  #allocation1 [shape = 'u32[144,128]{1,0:T(1,128)}', space=vmem, size = 0x12000, scoped, tag = 'internal scratch']
  %s0 = inlined_call_operand.vmem [shape: f32[896,8], index: 0, kind: input, shape index: {}]
  %s1 = inlined_call_operand.vmem [shape: f32[8,32], index: 1, kind: input, shape index: {}]
  %s2 = inlined_call_operand.vmem [shape: f32[1,32], index: 2, kind: input, shape index: {}]
  %s3 = inlined_call_operand.vmem [shape: f32[32,2], index: 3, kind: input, shape index: {}]
  %s4 = inlined_call_operand.vmem [shape: f32[1,2], index: 4, kind: input, shape index: {}]
  %s5 = inlined_call_operand.vmem [shape: f32[896,2], index: 5, kind: output, shape index: {}]
  %s6 = sld [smem:[#allocation0]]
  $region53: #{_mlp_forward.1} parent=0
    _
  %s8 = ssub.s32 1, %s6
  %s9 = scalar_select 0, %s8, %s6
  loop: start=0, step=1, limit=4
  $region2: #{_mlp_forward.1} parent=0 // loop_pre_header
    _
  $region3: #{_mlp_forward.1} parent=0 // loop_header
    %s11 = sphi 0, %s15
    %p12 = scmp.ge.s32.totalorder %s11, 4
    %s21 = sphi 0, %s23
    %s24 = sphi 0, %s21
    %s25 = sphi 0, %s24
    %s41 = sphi 0, %s25
    %s45 = sphi 0, %s45
    %s47 = sphi 0, %s45
    %s48 = sphi 0, %s47
    %s62 = sphi 0, %s48
    %s66 = sphi 0, %s66
    %s68 = sphi 0, %s66
    %s69 = sphi 0, %s68
    %s83 = sphi 0, %s69
    %s87 = sphi 0, %s87
    %s89 = sphi 0, %s87
    %s90 = sphi 0, %s89
    %s104 = sphi 0, %s90
    %s108 = sphi 0, %s108
    %s110 = sphi 0, %s108
    %s111 = sphi 0, %s110
    %s125 = sphi 0, %s111
    %s131 = sphi 0, %s133
    %s134 = sphi 0, %s131
    %s135 = sphi 0, %s134
    %s151 = sphi 0, %s135
  $region4: #{_mlp_forward.1} parent=0 // loop_header_branch
    %14 = sbr.rel (%p12) target = $region8
  $region5: #{_mlp_forward.1} parent=0 // loop_body
    %s16 = ssub.s32 %s11, 1
    %s17 = ssub.s32 %s11, 2
    %s18 = sadd.s32 %s11, 1
    %s19 = ssub.s32 %s11, %s18
    %p20 = scmp.eq.s32.totalorder %s19, 0
    %s22 = sadd.s32 %s21, 1
    %s23 = scalar_select %p20, %s21, %s22
    %p26 = pneg %p20
    %p27 = scmp.eq.s32.totalorder %s11, 1
    %p28 = por %p26, %p27
    %p29 = scmp.ne.s32.totalorder %s21, %s24
    %p30 = scmp.eq.s32.totalorder %s11, 0
    %p31 = por %p29, %p30
    %p32 = scmp.ne.s32.totalorder %s21, %s24
    %p33 = scmp.eq.s32.totalorder %s16, 1
    %p34 = por %p32, %p33
    %p35 = scmp.ne.s32.totalorder %s24, %s25
    %p36 = scmp.eq.s32.totalorder %s16, 0
    %p37 = por %p35, %p36
    %p38 = scmp.ne.s32.totalorder %s24, %s25
    %p39 = scmp.eq.s32.totalorder %s17, 1
    %p40 = por %p38, %p39
    %p42 = scmp.ne.s32.totalorder %s25, %s41
    %p43 = scmp.eq.s32.totalorder %s17, 0
    %p44 = por %p42, %p43
    %s46 = sadd.s32 %s45, 1
    %p49 = scmp.eq.s32.totalorder %s11, 1
    %p50 = scmp.ne.s32.totalorder %s45, %s47
    %p51 = scmp.eq.s32.totalorder %s11, 0
    %p52 = por %p50, %p51
    %p53 = scmp.ne.s32.totalorder %s45, %s47
    %p54 = scmp.eq.s32.totalorder %s16, 1
    %p55 = por %p53, %p54
    %p56 = scmp.ne.s32.totalorder %s47, %s48
    %p57 = scmp.eq.s32.totalorder %s16, 0
    %p58 = por %p56, %p57
    %p59 = scmp.ne.s32.totalorder %s47, %s48
    %p60 = scmp.eq.s32.totalorder %s17, 1
    %p61 = por %p59, %p60
    %p63 = scmp.ne.s32.totalorder %s48, %s62
    %p64 = scmp.eq.s32.totalorder %s17, 0
    %p65 = por %p63, %p64
    %s67 = sadd.s32 %s66, 1
    %p70 = scmp.eq.s32.totalorder %s11, 1
    %p71 = scmp.ne.s32.totalorder %s66, %s68
    %p72 = scmp.eq.s32.totalorder %s11, 0
    %p73 = por %p71, %p72
    %p74 = scmp.ne.s32.totalorder %s66, %s68
    %p75 = scmp.eq.s32.totalorder %s16, 1
    %p76 = por %p74, %p75
    %p77 = scmp.ne.s32.totalorder %s68, %s69
    %p78 = scmp.eq.s32.totalorder %s16, 0
    %p79 = por %p77, %p78
    %p80 = scmp.ne.s32.totalorder %s68, %s69
    %p81 = scmp.eq.s32.totalorder %s17, 1
    %p82 = por %p80, %p81
    %p84 = scmp.ne.s32.totalorder %s69, %s83
    %p85 = scmp.eq.s32.totalorder %s17, 0
    %p86 = por %p84, %p85
    %s88 = sadd.s32 %s87, 1
    %p91 = scmp.eq.s32.totalorder %s11, 1
    %p92 = scmp.ne.s32.totalorder %s87, %s89
    %p93 = scmp.eq.s32.totalorder %s11, 0
    %p94 = por %p92, %p93
    %p95 = scmp.ne.s32.totalorder %s87, %s89
    %p96 = scmp.eq.s32.totalorder %s16, 1
    %p97 = por %p95, %p96
    %p98 = scmp.ne.s32.totalorder %s89, %s90
    %p99 = scmp.eq.s32.totalorder %s16, 0
    %p100 = por %p98, %p99
    %p101 = scmp.ne.s32.totalorder %s89, %s90
    %p102 = scmp.eq.s32.totalorder %s17, 1
    %p103 = por %p101, %p102
    %p105 = scmp.ne.s32.totalorder %s90, %s104
    %p106 = scmp.eq.s32.totalorder %s17, 0
    %p107 = por %p105, %p106
    %s109 = sadd.s32 %s108, 1
    %p112 = scmp.eq.s32.totalorder %s11, 1
    %p113 = scmp.ne.s32.totalorder %s108, %s110
    %p114 = scmp.eq.s32.totalorder %s11, 0
    %p115 = por %p113, %p114
    %p116 = scmp.ne.s32.totalorder %s108, %s110
    %p117 = scmp.eq.s32.totalorder %s16, 1
    %p118 = por %p116, %p117
    %p119 = scmp.ne.s32.totalorder %s110, %s111
    %p120 = scmp.eq.s32.totalorder %s16, 0
    %p121 = por %p119, %p120
    %p122 = scmp.ne.s32.totalorder %s110, %s111
    %p123 = scmp.eq.s32.totalorder %s17, 1
    %p124 = por %p122, %p123
    %p126 = scmp.ne.s32.totalorder %s111, %s125
    %p127 = scmp.eq.s32.totalorder %s17, 0
    %p128 = por %p126, %p127
    %s129 = ssub.s32 %s11, %s18
    %p130 = scmp.eq.s32.totalorder %s129, 0
    %s132 = sadd.s32 %s131, 1
    %s133 = scalar_select %p130, %s131, %s132
    %p136 = pneg %p130
    %p137 = scmp.eq.s32.totalorder %s11, 1
    %p138 = por %p136, %p137
    %p139 = scmp.ne.s32.totalorder %s131, %s134
    %p140 = scmp.eq.s32.totalorder %s11, 0
    %p141 = por %p139, %p140
    %p142 = scmp.ne.s32.totalorder %s131, %s134
    %p143 = scmp.eq.s32.totalorder %s16, 1
    %p144 = por %p142, %p143
    %p145 = scmp.ne.s32.totalorder %s134, %s135
    %p146 = scmp.eq.s32.totalorder %s16, 0
    %p147 = por %p145, %p146
    %p148 = scmp.ne.s32.totalorder %s134, %s135
    %p149 = scmp.eq.s32.totalorder %s17, 1
    %p150 = por %p148, %p149
    %p152 = scmp.ne.s32.totalorder %s135, %s151
    %p153 = scmp.eq.s32.totalorder %s17, 0
    %p154 = por %p152, %p153
    %p155 = scmp.le.s32.totalorder 1, %s11
    %p156 = scmp.lt.s32.totalorder %s11, 3
    %p157 = pnand %p155, %p156
    %p158 = pneg %p157
    // Predicated region
    $region9: #{_mlp_forward.1} parent=5 // pred_check
      _
    $region10: #{_mlp_forward.1} parent=5 // pred_check_branch
      %160 = sbr.rel (%p157) target = $region12
    $region11: #{_mlp_forward.1} parent=5 // pred_region
      %s161 = ssub.s32 %s11, 1
      // Predicated region
      $region13: #{_mlp_forward.1} parent=11 // pred_check
        %p162 = pneg %p58
      $region14: #{_mlp_forward.1} parent=11 // pred_check_branch
        %164 = sbr.rel (%p162) target = $region16
      $region15: #{_mlp_forward.1} parent=11 // pred_region
        _
      $region16: #{_mlp_forward.1} parent=11 // pred_fallthru
        _
      // Predicated region
      $region17: #{_mlp_forward.1} parent=11 // pred_check
        %p165 = pneg %p79
      $region18: #{_mlp_forward.1} parent=11 // pred_check_branch
        %167 = sbr.rel (%p165) target = $region20
      $region19: #{_mlp_forward.1} parent=11 // pred_region
        _
      $region20: #{_mlp_forward.1} parent=11 // pred_fallthru
        _
      // Predicated region
      $region21: #{_mlp_forward.1} parent=11 // pred_check
        %p168 = pneg %p100
      $region22: #{_mlp_forward.1} parent=11 // pred_check_branch
        %170 = sbr.rel (%p168) target = $region24
      $region23: #{_mlp_forward.1} parent=11 // pred_region
        _
      $region24: #{_mlp_forward.1} parent=11 // pred_fallthru
        _
      // Predicated region
      $region25: #{_mlp_forward.1} parent=11 // pred_check
        %p171 = pneg %p121
      $region26: #{_mlp_forward.1} parent=11 // pred_check_branch
        %173 = sbr.rel (%p171) target = $region28
      $region27: #{_mlp_forward.1} parent=11 // pred_region
        _
      $region28: #{_mlp_forward.1} parent=11 // pred_fallthru
        _
    $region12: #{_mlp_forward.1} parent=5 // pred_fallthru
      _
    %p174 = scmp.lt.s32.totalorder %s11, 2
    // Predicated region
    $region29: #{_mlp_forward.1} parent=5 // pred_check
      %p175 = pneg %p174
    $region30: #{_mlp_forward.1} parent=5 // pred_check_branch
      %177 = sbr.rel (%p175) target = $region32
    $region31: #{_mlp_forward.1} parent=5 // pred_region
      // Predicated region
      $region33: #{_mlp_forward.1} parent=31 // pred_check
        %p178 = pneg %p31
      $region34: #{_mlp_forward.1} parent=31 // pred_check_branch
        %180 = sbr.rel (%p178) target = $region36
      $region35: #{_mlp_forward.1} parent=31 // pred_region
        %s181 = smul.u32 56, %s11
        %p182 = scmp.lt.s32.totalorder %s181, 111
        %s183 = scalar_select %p182, %s181, 111
        %s184 = smul.addr %s183, 8
        %s185 = scalar_lea.vmem %s0, %s184
        %s186 = smul.u32 56, %s11
      $region36: #{_mlp_forward.1} parent=31 // pred_fallthru
        _
    $region32: #{_mlp_forward.1} parent=5 // pred_fallthru
      _
    %p187 = scmp.le.s32.totalorder 1, %s11
    %p188 = scmp.lt.s32.totalorder %s11, 3
    %p189 = pnand %p187, %p188
    %p190 = pneg %p189
    // Predicated region
    $region37: #{_mlp_forward.1} parent=5 // pred_check
      _
    $region38: #{_mlp_forward.1} parent=5 // pred_check_branch
      %192 = sbr.rel (%p189) target = $region40
    $region39: #{_mlp_forward.1} parent=5 // pred_region
      %s193 = ssub.s32 %s11, 1
      %s194 = smul.u32 56, %s16
      %p195 = scmp.lt.s32.totalorder %s194, 111
      %s196 = scalar_select %p195, %s194, 111
      %s197 = smul.addr %s196, 8
      %s198 = scalar_lea.vmem %s0, %s197
      %p199 = pneg %p37
      %p200 = pneg %p34
      %p201 = pneg %p58
      %p202 = pneg %p55
      %p203 = pneg %p79
      %p204 = pneg %p76
      %p205 = pneg %p100
      %p206 = pneg %p97
      %p207 = pneg %p121
      %p208 = pneg %p118
      %p209 = pneg %p147
      %p210 = pneg %p144
      %s211 = smul.u32 56, %s16
      %p212 = scmp.lt.s32.totalorder %s211, 111
      %s213 = scalar_select %p212, %s211, 111
      %s214 = smul.addr %s213, 8
      %s215 = scalar_lea.vmem %s5, %s214
      %s216 = smul.u32 56, %s16
      %p217 = scmp.lt.s32.totalorder %s216, 111
      %s218 = scalar_select %p217, %s216, 111
      %s219 = smul.addr %s218, 8
      %s220 = scalar_lea.vmem %s0, %s219
      %s221 = smul.u32 56, %s16
      %s222 = smul.u32 56, %s16
      %p223 = scmp.lt.s32.totalorder %s222, 111
      %s224 = scalar_select %p223, %s222, 111
      %s225 = smul.addr %s224, 8
      %s226 = scalar_lea.vmem %s5, %s225
      %s227 = smul.u32 56, %s16
      %v228 = vld [vmem:[%s220] sm:$0xff]
      %v229 = vld [vmem:[%s220 + $0x8] sm:$0xff]
      %v230 = vld [vmem:[%s220 + $0x10] sm:$0xff]
      %v231 = vld [vmem:[%s220 + $0x18] sm:$0xff]
      %v232 = vld [vmem:[%s220 + $0x20] sm:$0xff]
      %v233 = vld [vmem:[%s220 + $0x28] sm:$0xff]
      %v234 = vld [vmem:[%s220 + $0x30] sm:$0xff]
      %v235 = vld [vmem:[%s220 + $0x38] sm:$0xff]
      %v236 = vld [vmem:[%s220 + $0x40] sm:$0xff]
      %v237 = vld [vmem:[%s220 + $0x48] sm:$0xff]
      %v238 = vld [vmem:[%s220 + $0x50] sm:$0xff]
      %v239 = vld [vmem:[%s220 + $0x58] sm:$0xff]
      %v240 = vld [vmem:[%s220 + $0x60] sm:$0xff]
      %v241 = vld [vmem:[%s220 + $0x68] sm:$0xff]
      %v242 = vld [vmem:[%s220 + $0x70] sm:$0xff]
      %v243 = vld [vmem:[%s220 + $0x78] sm:$0xff]
      %v244 = vld [vmem:[%s220 + $0x80] sm:$0xff]
      %v245 = vld [vmem:[%s220 + $0x88] sm:$0xff]
      %v246 = vld [vmem:[%s220 + $0x90] sm:$0xff]
      %v247 = vld [vmem:[%s220 + $0x98] sm:$0xff]
      %v248 = vld [vmem:[%s220 + $0xa0] sm:$0xff]
      %v249 = vld [vmem:[%s220 + $0xa8] sm:$0xff]
      %v250 = vld [vmem:[%s220 + $0xb0] sm:$0xff]
      %v251 = vld [vmem:[%s220 + $0xb8] sm:$0xff]
      %v252 = vld [vmem:[%s220 + $0xc0] sm:$0xff]
      %v253 = vld [vmem:[%s220 + $0xc8] sm:$0xff]
      %v254 = vld [vmem:[%s220 + $0xd0] sm:$0xff]
      %v255 = vld [vmem:[%s220 + $0xd8] sm:$0xff]
      %v256 = vld [vmem:[%s220 + $0xe0] sm:$0xff]
      %v257 = vld [vmem:[%s220 + $0xe8] sm:$0xff]
      %v258 = vld [vmem:[%s220 + $0xf0] sm:$0xff]
      %v259 = vld [vmem:[%s220 + $0xf8] sm:$0xff]
      %v260 = vld [vmem:[%s220 + $0x100] sm:$0xff]
      %v261 = vld [vmem:[%s220 + $0x108] sm:$0xff]
      %v262 = vld [vmem:[%s220 + $0x110] sm:$0xff]
      %v263 = vld [vmem:[%s220 + $0x118] sm:$0xff]
      %v264 = vld [vmem:[%s220 + $0x120] sm:$0xff]
      %v265 = vld [vmem:[%s220 + $0x128] sm:$0xff]
      %v266 = vld [vmem:[%s220 + $0x130] sm:$0xff]
      %v267 = vld [vmem:[%s220 + $0x138] sm:$0xff]
      %v268 = vld [vmem:[%s220 + $0x140] sm:$0xff]
      %v269 = vld [vmem:[%s220 + $0x148] sm:$0xff]
      %v270 = vld [vmem:[%s220 + $0x150] sm:$0xff]
      %v271 = vld [vmem:[%s220 + $0x158] sm:$0xff]
      %v272 = vld [vmem:[%s220 + $0x160] sm:$0xff]
      %v273 = vld [vmem:[%s220 + $0x168] sm:$0xff]
      %v274 = vld [vmem:[%s220 + $0x170] sm:$0xff]
      %v275 = vld [vmem:[%s220 + $0x178] sm:$0xff]
      %v276 = vld [vmem:[%s220 + $0x180] sm:$0xff]
      %v277 = vld [vmem:[%s220 + $0x188] sm:$0xff]
      %v278 = vld [vmem:[%s220 + $0x190] sm:$0xff]
      %v279 = vld [vmem:[%s220 + $0x198] sm:$0xff]
      %v280 = vld [vmem:[%s220 + $0x1a0] sm:$0xff]
      %v281 = vld [vmem:[%s220 + $0x1a8] sm:$0xff]
      %v282 = vld [vmem:[%s220 + $0x1b0] sm:$0xff]
      %v283 = vld [vmem:[%s220 + $0x1b8] sm:$0xff]
      %v284 = vld [vmem:[%s1] sm:$0xff]
      %v285 = vld [vmem:[%s2] sm:$0x1]
      %v287 = vlaneseq
      %v288 = vshrl.u32 %v287, 7
      %v289 = vsub.s32 0, %v288
      %v290 = vrot.slane %v285, %v289
      %vm292 = vcmask 64512
      %v294 = vsel %vm292, %v228, 0
      %v297 = vsel %vm292, %v229, 0
      %v300 = vsel %vm292, %v230, 0
      %v303 = vsel %vm292, %v231, 0
      %v306 = vsel %vm292, %v232, 0
      %v309 = vsel %vm292, %v233, 0
      %v312 = vsel %vm292, %v234, 0
      %v315 = vsel %vm292, %v235, 0
      %v318 = vsel %vm292, %v236, 0
      %v321 = vsel %vm292, %v237, 0
      %v324 = vsel %vm292, %v238, 0
      %v327 = vsel %vm292, %v239, 0
      %v330 = vsel %vm292, %v240, 0
      %v333 = vsel %vm292, %v241, 0
      %v336 = vsel %vm292, %v242, 0
      %v339 = vsel %vm292, %v243, 0
      %v342 = vsel %vm292, %v244, 0
      %v345 = vsel %vm292, %v245, 0
      %v348 = vsel %vm292, %v246, 0
      %v351 = vsel %vm292, %v247, 0
      %v354 = vsel %vm292, %v248, 0
      %v357 = vsel %vm292, %v249, 0
      %v360 = vsel %vm292, %v250, 0
      %v363 = vsel %vm292, %v251, 0
      %v366 = vsel %vm292, %v252, 0
      %v369 = vsel %vm292, %v253, 0
      %v372 = vsel %vm292, %v254, 0
      %v375 = vsel %vm292, %v255, 0
      %v378 = vsel %vm292, %v256, 0
      %v381 = vsel %vm292, %v257, 0
      %v384 = vsel %vm292, %v258, 0
      %v387 = vsel %vm292, %v259, 0
      %v390 = vsel %vm292, %v260, 0
      %v393 = vsel %vm292, %v261, 0
      %v396 = vsel %vm292, %v262, 0
      %v399 = vsel %vm292, %v263, 0
      %v402 = vsel %vm292, %v264, 0
      %v405 = vsel %vm292, %v265, 0
      %v408 = vsel %vm292, %v266, 0
      %v411 = vsel %vm292, %v267, 0
      %v414 = vsel %vm292, %v268, 0
      %v417 = vsel %vm292, %v269, 0
      %v420 = vsel %vm292, %v270, 0
      %v423 = vsel %vm292, %v271, 0
      %v426 = vsel %vm292, %v272, 0
      %v429 = vsel %vm292, %v273, 0
      %v432 = vsel %vm292, %v274, 0
      %v435 = vsel %vm292, %v275, 0
      %v438 = vsel %vm292, %v276, 0
      %v441 = vsel %vm292, %v277, 0
      %v444 = vsel %vm292, %v278, 0
      %v447 = vsel %vm292, %v279, 0
      %v450 = vsel %vm292, %v280, 0
      %v453 = vsel %vm292, %v281, 0
      %v456 = vsel %vm292, %v282, 0
      %v459 = vsel %vm292, %v283, 0
      %461 = vmatprep.subr.mxu0 0.0
      %462 = vmatpush1.msra.mxu0 %v284
      %463 = vmatprep.subr.mxu0 0.0
      %464 = vmatpush1.msra.mxu0 0.0
      %465 = vmatprep.subr.mxu0 0.0
      %466 = vmatpush1.msra.mxu0 0.0
      %467 = vmatprep.subr.mxu0 0.0
      %468 = vmatpush1.msra.mxu0 0.0
      %469 = vmatprep.subr.mxu0 0.0
      %470 = vmatpush1.msra.mxu0 0.0
      %471 = vmatprep.subr.mxu0 0.0
      %472 = vmatpush1.msra.mxu0 0.0
      %473 = vmatprep.subr.mxu0 0.0
      %474 = vmatpush1.msra.mxu0 0.0
      %475 = vmatprep.subr.mxu0 0.0
      %476 = vmatpush1.msra.mxu0 0.0
      %477 = vmatprep.subr.mxu0 0.0
      %478 = vmatpush1.msra.mxu0 0.0
      %479 = vmatprep.subr.mxu0 0.0
      %480 = vmatpush1.msra.mxu0 0.0
      %481 = vmatprep.subr.mxu0 0.0
      %482 = vmatpush1.msra.mxu0 0.0
      %483 = vmatprep.subr.mxu0 0.0
      %484 = vmatpush1.msra.mxu0 0.0
      %485 = vmatprep.subr.mxu0 0.0
      %486 = vmatpush1.msra.mxu0 0.0
      %487 = vmatprep.subr.mxu0 0.0
      %488 = vmatpush1.msra.mxu0 0.0
      %489 = vmatprep.subr.mxu0 0.0
      %490 = vmatpush1.msra.mxu0 0.0
      %491 = vmatprep.subr.mxu0 0.0
      %492 = vmatpush1.msra.mxu0 0.0
      %493 = vmatprep.subr.mxu0 0.0
      %494 = vmatpush1.msra.mxu0 0.0
      %495 = vmatprep.subr.mxu0 0.0
      %496 = vmatpush1.msra.mxu0 0.0
      %497 = vmatprep.subr.mxu0 0.0
      %498 = vmatpush1.msra.mxu0 0.0
      %499 = vmatprep.subr.mxu0 0.0
      %500 = vmatpush1.msra.mxu0 0.0
      %501 = vmatprep.subr.mxu0 0.0
      %502 = vmatpush1.msra.mxu0 0.0
      %503 = vmatprep.subr.mxu0 0.0
      %504 = vmatpush1.msra.mxu0 0.0
      %505 = vmatprep.subr.mxu0 0.0
      %506 = vmatpush1.msra.mxu0 0.0
      %507 = vmatprep.subr.mxu0 0.0
      %508 = vmatpush1.msra.mxu0 0.0
      %509 = vmatprep.subr.mxu0 0.0
      %510 = vmatpush1.msra.mxu0 0.0
      %511 = vmatprep.subr.mxu0 0.0
      %512 = vmatpush1.msra.mxu0 0.0
      %513 = vmatprep.subr.mxu0 0.0
      %514 = vmatpush1.msra.mxu0 0.0
      %515 = vmatprep.subr.mxu0 0.0
      %516 = vmatpush1.msra.mxu0 0.0
      %517 = vmatprep.subr.mxu0 0.0
      %518 = vmatpush1.msra.mxu0 0.0
      %519 = vmatprep.subr.mxu0 0.0
      %520 = vmatpush1.msra.mxu0 0.0
      %521 = vmatprep.subr.mxu0 0.0
      %522 = vmatpush1.msra.mxu0 0.0
      %523 = vmatprep.subr.mxu0 0.0
      %524 = vmatpush1.msra.mxu0 0.0
      %525 = vmatprep.mubr.f32.mxu0 0.0
      %526 = vmatmul.mubr.f32.gmra.mrb[0].mxu0 %v294
      %v527 = vpop.f32.mrb[0].mxu0
      %v528 = vadd.f32 %v290, %v527
      %v529 = vpop.f32.mrb[0].mxu0
      %530 = vmatprep.mubr.f32.mxu0 0.0
      %531 = vmatmul.mubr.f32.gmra.mrb[0].mxu0 %v297
      %v532 = vpop.f32.mrb[0].mxu0
      %v533 = vadd.f32 %v290, %v532
      %v534 = vpop.f32.mrb[0].mxu0
      %535 = vmatprep.mubr.f32.mxu0 0.0
      %536 = vmatmul.mubr.f32.gmra.mrb[0].mxu0 %v300
      %v537 = vpop.f32.mrb[0].mxu0
      %v538 = vadd.f32 %v290, %v537
      %v539 = vpop.f32.mrb[0].mxu0
      %540 = vmatprep.mubr.f32.mxu0 0.0
      %541 = vmatmul.mubr.f32.gmra.mrb[0].mxu0 %v303
      %v542 = vpop.f32.mrb[0].mxu0
      %v543 = vadd.f32 %v290, %v542
      %v544 = vpop.f32.mrb[0].mxu0
      %545 = vmatprep.mubr.f32.mxu0 0.0
      %546 = vmatmul.mubr.f32.gmra.mrb[0].mxu0 %v306
      %v547 = vpop.f32.mrb[0].mxu0
      %v548 = vadd.f32 %v290, %v547
      %v549 = vpop.f32.mrb[0].mxu0
      %550 = vmatprep.mubr.f32.mxu0 0.0
      %551 = vmatmul.mubr.f32.gmra.mrb[0].mxu0 %v309
      %v552 = vpop.f32.mrb[0].mxu0
      %v553 = vadd.f32 %v290, %v552
      %v554 = vpop.f32.mrb[0].mxu0
      %555 = vmatprep.mubr.f32.mxu0 0.0
      %556 = vmatmul.mubr.f32.gmra.mrb[0].mxu0 %v312
      %v557 = vpop.f32.mrb[0].mxu0
      %v558 = vadd.f32 %v290, %v557
      %v559 = vpop.f32.mrb[0].mxu0
      %560 = vmatprep.mubr.f32.mxu0 0.0
      %561 = vmatmul.mubr.f32.gmra.mrb[0].mxu0 %v315
      %v562 = vpop.f32.mrb[0].mxu0
      %v563 = vadd.f32 %v290, %v562
      %v564 = vpop.f32.mrb[0].mxu0
      %565 = vmatprep.mubr.f32.mxu0 0.0
      %566 = vmatmul.mubr.f32.gmra.mrb[0].mxu0 %v318
      %v567 = vpop.f32.mrb[0].mxu0
      %v568 = vadd.f32 %v290, %v567
      %v569 = vpop.f32.mrb[0].mxu0
      %570 = vmatprep.mubr.f32.mxu0 0.0
      %571 = vmatmul.mubr.f32.gmra.mrb[0].mxu0 %v321
      %v572 = vpop.f32.mrb[0].mxu0
      %v573 = vadd.f32 %v290, %v572
      %v574 = vpop.f32.mrb[0].mxu0
      %575 = vmatprep.mubr.f32.mxu0 0.0
      %576 = vmatmul.mubr.f32.gmra.mrb[0].mxu0 %v324
      %v577 = vpop.f32.mrb[0].mxu0
      %v578 = vadd.f32 %v290, %v577
      %v579 = vpop.f32.mrb[0].mxu0
      %580 = vmatprep.mubr.f32.mxu0 0.0
      %581 = vmatmul.mubr.f32.gmra.mrb[0].mxu0 %v327
      %v582 = vpop.f32.mrb[0].mxu0
      %v583 = vadd.f32 %v290, %v582
      %v584 = vpop.f32.mrb[0].mxu0
      %585 = vmatprep.mubr.f32.mxu0 0.0
      %586 = vmatmul.mubr.f32.gmra.mrb[0].mxu0 %v330
      %v587 = vpop.f32.mrb[0].mxu0
      %v588 = vadd.f32 %v290, %v587
      %v589 = vpop.f32.mrb[0].mxu0
      %590 = vmatprep.mubr.f32.mxu0 0.0
      %591 = vmatmul.mubr.f32.gmra.mrb[0].mxu0 %v333
      %v592 = vpop.f32.mrb[0].mxu0
      %v593 = vadd.f32 %v290, %v592
      %v594 = vpop.f32.mrb[0].mxu0
      %595 = vmatprep.mubr.f32.mxu0 0.0
      %596 = vmatmul.mubr.f32.gmra.mrb[0].mxu0 %v336
      %v597 = vpop.f32.mrb[0].mxu0
      %v598 = vadd.f32 %v290, %v597
      %v599 = vpop.f32.mrb[0].mxu0
      %600 = vmatprep.mubr.f32.mxu0 0.0
      %601 = vmatmul.mubr.f32.gmra.mrb[0].mxu0 %v339
      %v602 = vpop.f32.mrb[0].mxu0
      %v603 = vadd.f32 %v290, %v602
      %v604 = vpop.f32.mrb[0].mxu0
      %605 = vmatprep.mubr.f32.mxu0 0.0
      %606 = vmatmul.mubr.f32.gmra.mrb[0].mxu0 %v342
      %v607 = vpop.f32.mrb[0].mxu0
      %v608 = vadd.f32 %v290, %v607
      %v609 = vpop.f32.mrb[0].mxu0
      %610 = vmatprep.mubr.f32.mxu0 0.0
      %611 = vmatmul.mubr.f32.gmra.mrb[0].mxu0 %v345
      %v612 = vpop.f32.mrb[0].mxu0
      %v613 = vadd.f32 %v290, %v612
      %v614 = vpop.f32.mrb[0].mxu0
      %615 = vmatprep.mubr.f32.mxu0 0.0
      %616 = vmatmul.mubr.f32.gmra.mrb[0].mxu0 %v348
      %v617 = vpop.f32.mrb[0].mxu0
      %v618 = vadd.f32 %v290, %v617
      %v619 = vpop.f32.mrb[0].mxu0
      %620 = vmatprep.mubr.f32.mxu0 0.0
      %621 = vmatmul.mubr.f32.gmra.mrb[0].mxu0 %v351
      %v622 = vpop.f32.mrb[0].mxu0
      %v623 = vadd.f32 %v290, %v622
      %v624 = vpop.f32.mrb[0].mxu0
      %625 = vmatprep.mubr.f32.mxu0 0.0
      %626 = vmatmul.mubr.f32.gmra.mrb[0].mxu0 %v354
      %v627 = vpop.f32.mrb[0].mxu0
      %v628 = vadd.f32 %v290, %v627
      %v629 = vpop.f32.mrb[0].mxu0
      %630 = vmatprep.mubr.f32.mxu0 0.0
      %631 = vmatmul.mubr.f32.gmra.mrb[0].mxu0 %v357
      %v632 = vpop.f32.mrb[0].mxu0
      %v633 = vadd.f32 %v290, %v632
      %v634 = vpop.f32.mrb[0].mxu0
      %635 = vmatprep.mubr.f32.mxu0 0.0
      %636 = vmatmul.mubr.f32.gmra.mrb[0].mxu0 %v360
      %v637 = vpop.f32.mrb[0].mxu0
      %v638 = vadd.f32 %v290, %v637
      %v639 = vpop.f32.mrb[0].mxu0
      %640 = vmatprep.mubr.f32.mxu0 0.0
      %641 = vmatmul.mubr.f32.gmra.mrb[0].mxu0 %v363
      %v642 = vpop.f32.mrb[0].mxu0
      %v643 = vadd.f32 %v290, %v642
      %v644 = vpop.f32.mrb[0].mxu0
      %645 = vmatprep.mubr.f32.mxu0 0.0
      %646 = vmatmul.mubr.f32.gmra.mrb[0].mxu0 %v366
      %v647 = vpop.f32.mrb[0].mxu0
      %v648 = vadd.f32 %v290, %v647
      %v649 = vpop.f32.mrb[0].mxu0
      %650 = vmatprep.mubr.f32.mxu0 0.0
      %651 = vmatmul.mubr.f32.gmra.mrb[0].mxu0 %v369
      %v652 = vpop.f32.mrb[0].mxu0
      %v653 = vadd.f32 %v290, %v652
      %v654 = vpop.f32.mrb[0].mxu0
      %655 = vmatprep.mubr.f32.mxu0 0.0
      %656 = vmatmul.mubr.f32.gmra.mrb[0].mxu0 %v372
      %v657 = vpop.f32.mrb[0].mxu0
      %v658 = vadd.f32 %v290, %v657
      %v659 = vpop.f32.mrb[0].mxu0
      %660 = vmatprep.mubr.f32.mxu0 0.0
      %661 = vmatmul.mubr.f32.gmra.mrb[0].mxu0 %v375
      %v662 = vpop.f32.mrb[0].mxu0
      %v663 = vadd.f32 %v290, %v662
      %v664 = vpop.f32.mrb[0].mxu0
      %665 = vmatprep.mubr.f32.mxu0 0.0
      %666 = vmatmul.mubr.f32.gmra.mrb[0].mxu0 %v378
      %v667 = vpop.f32.mrb[0].mxu0
      %v668 = vadd.f32 %v290, %v667
      %v669 = vpop.f32.mrb[0].mxu0
      %670 = vmatprep.mubr.f32.mxu0 0.0
      %671 = vmatmul.mubr.f32.gmra.mrb[0].mxu0 %v381
      %v672 = vpop.f32.mrb[0].mxu0
      %v673 = vadd.f32 %v290, %v672
      %v674 = vpop.f32.mrb[0].mxu0
      %675 = vmatprep.mubr.f32.mxu0 0.0
      %676 = vmatmul.mubr.f32.gmra.mrb[0].mxu0 %v384
      %v677 = vpop.f32.mrb[0].mxu0
      %v678 = vadd.f32 %v290, %v677
      %v679 = vpop.f32.mrb[0].mxu0
      %680 = vmatprep.mubr.f32.mxu0 0.0
      %681 = vmatmul.mubr.f32.gmra.mrb[0].mxu0 %v387
      %v682 = vpop.f32.mrb[0].mxu0
      %v683 = vadd.f32 %v290, %v682
      %v684 = vpop.f32.mrb[0].mxu0
      %685 = vmatprep.mubr.f32.mxu0 0.0
      %686 = vmatmul.mubr.f32.gmra.mrb[0].mxu0 %v390
      %v687 = vpop.f32.mrb[0].mxu0
      %v688 = vadd.f32 %v290, %v687
      %v689 = vpop.f32.mrb[0].mxu0
      %690 = vmatprep.mubr.f32.mxu0 0.0
      %691 = vmatmul.mubr.f32.gmra.mrb[0].mxu0 %v393
      %v692 = vpop.f32.mrb[0].mxu0
      %v693 = vadd.f32 %v290, %v692
      %v694 = vpop.f32.mrb[0].mxu0
      %695 = vmatprep.mubr.f32.mxu0 0.0
      %696 = vmatmul.mubr.f32.gmra.mrb[0].mxu0 %v396
      %v697 = vpop.f32.mrb[0].mxu0
      %v698 = vadd.f32 %v290, %v697
      %v699 = vpop.f32.mrb[0].mxu0
      %700 = vmatprep.mubr.f32.mxu0 0.0
      %701 = vmatmul.mubr.f32.gmra.mrb[0].mxu0 %v399
      %v702 = vpop.f32.mrb[0].mxu0
      %v703 = vadd.f32 %v290, %v702
      %v704 = vpop.f32.mrb[0].mxu0
      %705 = vmatprep.mubr.f32.mxu0 0.0
      %706 = vmatmul.mubr.f32.gmra.mrb[0].mxu0 %v402
      %v707 = vpop.f32.mrb[0].mxu0
      %v708 = vadd.f32 %v290, %v707
      %v709 = vpop.f32.mrb[0].mxu0
      %710 = vmatprep.mubr.f32.mxu0 0.0
      %711 = vmatmul.mubr.f32.gmra.mrb[0].mxu0 %v405
      %v712 = vpop.f32.mrb[0].mxu0
      %v713 = vadd.f32 %v290, %v712
      %v714 = vpop.f32.mrb[0].mxu0
      %715 = vmatprep.mubr.f32.mxu0 0.0
      %716 = vmatmul.mubr.f32.gmra.mrb[0].mxu0 %v408
      %v717 = vpop.f32.mrb[0].mxu0
      %v718 = vadd.f32 %v290, %v717
      %v719 = vpop.f32.mrb[0].mxu0
      %720 = vmatprep.mubr.f32.mxu0 0.0
      %721 = vmatmul.mubr.f32.gmra.mrb[0].mxu0 %v411
      %v722 = vpop.f32.mrb[0].mxu0
      %v723 = vadd.f32 %v290, %v722
      %v724 = vpop.f32.mrb[0].mxu0
      %725 = vmatprep.mubr.f32.mxu0 0.0
      %726 = vmatmul.mubr.f32.gmra.mrb[0].mxu0 %v414
      %v727 = vpop.f32.mrb[0].mxu0
      %v728 = vadd.f32 %v290, %v727
      %v729 = vpop.f32.mrb[0].mxu0
      %730 = vmatprep.mubr.f32.mxu0 0.0
      %731 = vmatmul.mubr.f32.gmra.mrb[0].mxu0 %v417
      %v732 = vpop.f32.mrb[0].mxu0
      %v733 = vadd.f32 %v290, %v732
      %v734 = vpop.f32.mrb[0].mxu0
      %735 = vmatprep.mubr.f32.mxu0 0.0
      %736 = vmatmul.mubr.f32.gmra.mrb[0].mxu0 %v420
      %v737 = vpop.f32.mrb[0].mxu0
      %v738 = vadd.f32 %v290, %v737
      %v739 = vpop.f32.mrb[0].mxu0
      %740 = vmatprep.mubr.f32.mxu0 0.0
      %741 = vmatmul.mubr.f32.gmra.mrb[0].mxu0 %v423
      %v742 = vpop.f32.mrb[0].mxu0
      %v743 = vadd.f32 %v290, %v742
      %v744 = vpop.f32.mrb[0].mxu0
      %745 = vmatprep.mubr.f32.mxu0 0.0
      %746 = vmatmul.mubr.f32.gmra.mrb[0].mxu0 %v426
      %v747 = vpop.f32.mrb[0].mxu0
      %v748 = vadd.f32 %v290, %v747
      %v749 = vpop.f32.mrb[0].mxu0
      %750 = vmatprep.mubr.f32.mxu0 0.0
      %751 = vmatmul.mubr.f32.gmra.mrb[0].mxu0 %v429
      %v752 = vpop.f32.mrb[0].mxu0
      %v753 = vadd.f32 %v290, %v752
      %v754 = vpop.f32.mrb[0].mxu0
      %755 = vmatprep.mubr.f32.mxu0 0.0
      %756 = vmatmul.mubr.f32.gmra.mrb[0].mxu0 %v432
      %v757 = vpop.f32.mrb[0].mxu0
      %v758 = vadd.f32 %v290, %v757
      %v759 = vpop.f32.mrb[0].mxu0
      %760 = vmatprep.mubr.f32.mxu0 0.0
      %761 = vmatmul.mubr.f32.gmra.mrb[0].mxu0 %v435
      %v762 = vpop.f32.mrb[0].mxu0
      %v763 = vadd.f32 %v290, %v762
      %v764 = vpop.f32.mrb[0].mxu0
      %765 = vmatprep.mubr.f32.mxu0 0.0
      %766 = vmatmul.mubr.f32.gmra.mrb[0].mxu0 %v438
      %v767 = vpop.f32.mrb[0].mxu0
      %v768 = vadd.f32 %v290, %v767
      %v769 = vpop.f32.mrb[0].mxu0
      %770 = vmatprep.mubr.f32.mxu0 0.0
      %771 = vmatmul.mubr.f32.gmra.mrb[0].mxu0 %v441
      %v772 = vpop.f32.mrb[0].mxu0
      %v773 = vadd.f32 %v290, %v772
      %v774 = vpop.f32.mrb[0].mxu0
      %775 = vmatprep.mubr.f32.mxu0 0.0
      %776 = vmatmul.mubr.f32.gmra.mrb[0].mxu0 %v444
      %v777 = vpop.f32.mrb[0].mxu0
      %v778 = vadd.f32 %v290, %v777
      %v779 = vpop.f32.mrb[0].mxu0
      %780 = vmatprep.mubr.f32.mxu0 0.0
      %781 = vmatmul.mubr.f32.gmra.mrb[0].mxu0 %v447
      %v782 = vpop.f32.mrb[0].mxu0
      %v783 = vadd.f32 %v290, %v782
      %v784 = vpop.f32.mrb[0].mxu0
      %785 = vmatprep.mubr.f32.mxu0 0.0
      %786 = vmatmul.mubr.f32.gmra.mrb[0].mxu0 %v450
      %v787 = vpop.f32.mrb[0].mxu0
      %v788 = vadd.f32 %v290, %v787
      %v789 = vpop.f32.mrb[0].mxu0
      %790 = vmatprep.mubr.f32.mxu0 0.0
      %791 = vmatmul.mubr.f32.gmra.mrb[0].mxu0 %v453
      %v792 = vpop.f32.mrb[0].mxu0
      %v793 = vadd.f32 %v290, %v792
      %v794 = vpop.f32.mrb[0].mxu0
      %795 = vmatprep.mubr.f32.mxu0 0.0
      %796 = vmatmul.mubr.f32.gmra.mrb[0].mxu0 %v456
      %v797 = vpop.f32.mrb[0].mxu0
      %v798 = vadd.f32 %v290, %v797
      %v799 = vpop.f32.mrb[0].mxu0
      %800 = vmatprep.mubr.f32.mxu0 0.0
      %801 = vmatmul.mubr.f32.gmra.mrb[0].mxu0 %v459
      %v802 = vpop.f32.mrb[0].mxu0
      %v803 = vadd.f32 %v290, %v802
      %v804 = vpop.f32.mrb[0].mxu0
      %805 = vdwg.mxu0
      %v806 = vmax.f32 %v528, 0.0
      %v807 = vmax.f32 %v533, 0.0
      %v808 = vmax.f32 %v538, 0.0
      %v809 = vmax.f32 %v543, 0.0
      %v810 = vmax.f32 %v548, 0.0
      %v811 = vmax.f32 %v553, 0.0
      %v812 = vmax.f32 %v558, 0.0
      %v813 = vmax.f32 %v563, 0.0
      %v814 = vmax.f32 %v568, 0.0
      %v815 = vmax.f32 %v573, 0.0
      %v816 = vmax.f32 %v578, 0.0
      %v817 = vmax.f32 %v583, 0.0
      %v818 = vmax.f32 %v588, 0.0
      %v819 = vmax.f32 %v593, 0.0
      %v820 = vmax.f32 %v598, 0.0
      %v821 = vmax.f32 %v603, 0.0
      %v822 = vmax.f32 %v608, 0.0
      %v823 = vmax.f32 %v613, 0.0
      %v824 = vmax.f32 %v618, 0.0
      %v825 = vmax.f32 %v623, 0.0
      %v826 = vmax.f32 %v628, 0.0
      %v827 = vmax.f32 %v633, 0.0
      %v828 = vmax.f32 %v638, 0.0
      %v829 = vmax.f32 %v643, 0.0
      %v830 = vmax.f32 %v648, 0.0
      %v831 = vmax.f32 %v653, 0.0
      %v832 = vmax.f32 %v658, 0.0
      %v833 = vmax.f32 %v663, 0.0
      %v834 = vmax.f32 %v668, 0.0
      %v835 = vmax.f32 %v673, 0.0
      %v836 = vmax.f32 %v678, 0.0
      %v837 = vmax.f32 %v683, 0.0
      %v838 = vmax.f32 %v688, 0.0
      %v839 = vmax.f32 %v693, 0.0
      %v840 = vmax.f32 %v698, 0.0
      %v841 = vmax.f32 %v703, 0.0
      %v842 = vmax.f32 %v708, 0.0
      %v843 = vmax.f32 %v713, 0.0
      %v844 = vmax.f32 %v718, 0.0
      %v845 = vmax.f32 %v723, 0.0
      %v846 = vmax.f32 %v728, 0.0
      %v847 = vmax.f32 %v733, 0.0
      %v848 = vmax.f32 %v738, 0.0
      %v849 = vmax.f32 %v743, 0.0
      %v850 = vmax.f32 %v748, 0.0
      %v851 = vmax.f32 %v753, 0.0
      %v852 = vmax.f32 %v758, 0.0
      %v853 = vmax.f32 %v763, 0.0
      %v854 = vmax.f32 %v768, 0.0
      %v855 = vmax.f32 %v773, 0.0
      %v856 = vmax.f32 %v778, 0.0
      %v857 = vmax.f32 %v783, 0.0
      %v858 = vmax.f32 %v788, 0.0
      %v859 = vmax.f32 %v793, 0.0
      %v860 = vmax.f32 %v798, 0.0
      %v861 = vmax.f32 %v803, 0.0
      %v862 = vld [vmem:[%s3] sm:$0xff]
      %v863 = vld [vmem:[%s3 + $0x8] sm:$0xff]
      %v864 = vld [vmem:[%s3 + $0x10] sm:$0xff]
      %v865 = vld [vmem:[%s3 + $0x18] sm:$0xff]
      %v866 = vld [vmem:[%s4] sm:$0x1]
      %v868 = vlaneseq
      %v869 = vshrl.u32 %v868, 7
      %v870 = vsub.s32 0, %v869
      %v871 = vrot.slane %v866, %v870
      %vm873 = vcmask 261120
      %v875 = vsel %vm873, %v806, 0
      %v878 = vsel %vm873, %v807, 0
      %v881 = vsel %vm873, %v808, 0
      %v884 = vsel %vm873, %v809, 0
      %v887 = vsel %vm873, %v810, 0
      %v890 = vsel %vm873, %v811, 0
      %v893 = vsel %vm873, %v812, 0
      %v896 = vsel %vm873, %v813, 0
      %v899 = vsel %vm873, %v814, 0
      %v902 = vsel %vm873, %v815, 0
      %v905 = vsel %vm873, %v816, 0
      %v908 = vsel %vm873, %v817, 0
      %v911 = vsel %vm873, %v818, 0
      %v914 = vsel %vm873, %v819, 0
      %v917 = vsel %vm873, %v820, 0
      %v920 = vsel %vm873, %v821, 0
      %v923 = vsel %vm873, %v822, 0
      %v926 = vsel %vm873, %v823, 0
      %v929 = vsel %vm873, %v824, 0
      %v932 = vsel %vm873, %v825, 0
      %v935 = vsel %vm873, %v826, 0
      %v938 = vsel %vm873, %v827, 0
      %v941 = vsel %vm873, %v828, 0
      %v944 = vsel %vm873, %v829, 0
      %v947 = vsel %vm873, %v830, 0
      %v950 = vsel %vm873, %v831, 0
      %v953 = vsel %vm873, %v832, 0
      %v956 = vsel %vm873, %v833, 0
      %v959 = vsel %vm873, %v834, 0
      %v962 = vsel %vm873, %v835, 0
      %v965 = vsel %vm873, %v836, 0
      %v968 = vsel %vm873, %v837, 0
      %v971 = vsel %vm873, %v838, 0
      %v974 = vsel %vm873, %v839, 0
      %v977 = vsel %vm873, %v840, 0
      %v980 = vsel %vm873, %v841, 0
      %v983 = vsel %vm873, %v842, 0
      %v986 = vsel %vm873, %v843, 0
      %v989 = vsel %vm873, %v844, 0
      %v992 = vsel %vm873, %v845, 0
      %v995 = vsel %vm873, %v846, 0
      %v998 = vsel %vm873, %v847, 0
      %v1001 = vsel %vm873, %v848, 0
      %v1004 = vsel %vm873, %v849, 0
      %v1007 = vsel %vm873, %v850, 0
      %v1010 = vsel %vm873, %v851, 0
      %v1013 = vsel %vm873, %v852, 0
      %v1016 = vsel %vm873, %v853, 0
      %v1019 = vsel %vm873, %v854, 0
      %v1022 = vsel %vm873, %v855, 0
      %v1025 = vsel %vm873, %v856, 0
      %v1028 = vsel %vm873, %v857, 0
      %v1031 = vsel %vm873, %v858, 0
      %v1034 = vsel %vm873, %v859, 0
      %v1037 = vsel %vm873, %v860, 0
      %v1040 = vsel %vm873, %v861, 0
      %1042 = vmatprep.subr.mxu0 0.0
      %1043 = vmatpush1.msra.mxu0 %v862
      %1044 = vmatprep.subr.mxu0 0.0
      %1045 = vmatpush1.msra.mxu0 %v863
      %1046 = vmatprep.subr.mxu0 0.0
      %1047 = vmatpush1.msra.mxu0 %v864
      %1048 = vmatprep.subr.mxu0 0.0
      %1049 = vmatpush1.msra.mxu0 %v865
      %1050 = vmatprep.subr.mxu0 0.0
      %1051 = vmatpush1.msra.mxu0 0.0
      %1052 = vmatprep.subr.mxu0 0.0
      %1053 = vmatpush1.msra.mxu0 0.0
      %1054 = vmatprep.subr.mxu0 0.0
      %1055 = vmatpush1.msra.mxu0 0.0
      %1056 = vmatprep.subr.mxu0 0.0
      %1057 = vmatpush1.msra.mxu0 0.0
      %1058 = vmatprep.subr.mxu0 0.0
      %1059 = vmatpush1.msra.mxu0 0.0
      %1060 = vmatprep.subr.mxu0 0.0
      %1061 = vmatpush1.msra.mxu0 0.0
      %1062 = vmatprep.subr.mxu0 0.0
      %1063 = vmatpush1.msra.mxu0 0.0
      %1064 = vmatprep.subr.mxu0 0.0
      %1065 = vmatpush1.msra.mxu0 0.0
      %1066 = vmatprep.subr.mxu0 0.0
      %1067 = vmatpush1.msra.mxu0 0.0
      %1068 = vmatprep.subr.mxu0 0.0
      %1069 = vmatpush1.msra.mxu0 0.0
      %1070 = vmatprep.subr.mxu0 0.0
      %1071 = vmatpush1.msra.mxu0 0.0
      %1072 = vmatprep.subr.mxu0 0.0
      %1073 = vmatpush1.msra.mxu0 0.0
      %1074 = vmatprep.subr.mxu0 0.0
      %1075 = vmatpush1.msra.mxu0 0.0
      %1076 = vmatprep.subr.mxu0 0.0
      %1077 = vmatpush1.msra.mxu0 0.0
      %1078 = vmatprep.subr.mxu0 0.0
      %1079 = vmatpush1.msra.mxu0 0.0
      %1080 = vmatprep.subr.mxu0 0.0
      %1081 = vmatpush1.msra.mxu0 0.0
      %1082 = vmatprep.subr.mxu0 0.0
      %1083 = vmatpush1.msra.mxu0 0.0
      %1084 = vmatprep.subr.mxu0 0.0
      %1085 = vmatpush1.msra.mxu0 0.0
      %1086 = vmatprep.subr.mxu0 0.0
      %1087 = vmatpush1.msra.mxu0 0.0
      %1088 = vmatprep.subr.mxu0 0.0
      %1089 = vmatpush1.msra.mxu0 0.0
      %1090 = vmatprep.subr.mxu0 0.0
      %1091 = vmatpush1.msra.mxu0 0.0
      %1092 = vmatprep.subr.mxu0 0.0
      %1093 = vmatpush1.msra.mxu0 0.0
      %1094 = vmatprep.subr.mxu0 0.0
      %1095 = vmatpush1.msra.mxu0 0.0
      %1096 = vmatprep.subr.mxu0 0.0
      %1097 = vmatpush1.msra.mxu0 0.0
      %1098 = vmatprep.subr.mxu0 0.0
      %1099 = vmatpush1.msra.mxu0 0.0
      %1100 = vmatprep.subr.mxu0 0.0
      %1101 = vmatpush1.msra.mxu0 0.0
      %1102 = vmatprep.subr.mxu0 0.0
      %1103 = vmatpush1.msra.mxu0 0.0
      %1104 = vmatprep.subr.mxu0 0.0
      %1105 = vmatpush1.msra.mxu0 0.0
      %1106 = vmatprep.mubr.f32.mxu0 0.0
      %1107 = vmatmul.mubr.f32.gmra.mrb[0].mxu0 %v875
      %v1108 = vpop.f32.mrb[0].mxu0
      %v1109 = vadd.f32 %v871, %v1108
      %v1110 = vpop.f32.mrb[0].mxu0
      %1111 = vmatprep.mubr.f32.mxu0 0.0
      %1112 = vmatmul.mubr.f32.gmra.mrb[0].mxu0 %v878
      %v1113 = vpop.f32.mrb[0].mxu0
      %v1114 = vadd.f32 %v871, %v1113
      %v1115 = vpop.f32.mrb[0].mxu0
      %1116 = vmatprep.mubr.f32.mxu0 0.0
      %1117 = vmatmul.mubr.f32.gmra.mrb[0].mxu0 %v881
      %v1118 = vpop.f32.mrb[0].mxu0
      %v1119 = vadd.f32 %v871, %v1118
      %v1120 = vpop.f32.mrb[0].mxu0
      %1121 = vmatprep.mubr.f32.mxu0 0.0
      %1122 = vmatmul.mubr.f32.gmra.mrb[0].mxu0 %v884
      %v1123 = vpop.f32.mrb[0].mxu0
      %v1124 = vadd.f32 %v871, %v1123
      %v1125 = vpop.f32.mrb[0].mxu0
      %1126 = vmatprep.mubr.f32.mxu0 0.0
      %1127 = vmatmul.mubr.f32.gmra.mrb[0].mxu0 %v887
      %v1128 = vpop.f32.mrb[0].mxu0
      %v1129 = vadd.f32 %v871, %v1128
      %v1130 = vpop.f32.mrb[0].mxu0
      %1131 = vmatprep.mubr.f32.mxu0 0.0
      %1132 = vmatmul.mubr.f32.gmra.mrb[0].mxu0 %v890
      %v1133 = vpop.f32.mrb[0].mxu0
      %v1134 = vadd.f32 %v871, %v1133
      %v1135 = vpop.f32.mrb[0].mxu0
      %1136 = vmatprep.mubr.f32.mxu0 0.0
      %1137 = vmatmul.mubr.f32.gmra.mrb[0].mxu0 %v893
      %v1138 = vpop.f32.mrb[0].mxu0
      %v1139 = vadd.f32 %v871, %v1138
      %v1140 = vpop.f32.mrb[0].mxu0
      %1141 = vmatprep.mubr.f32.mxu0 0.0
      %1142 = vmatmul.mubr.f32.gmra.mrb[0].mxu0 %v896
      %v1143 = vpop.f32.mrb[0].mxu0
      %v1144 = vadd.f32 %v871, %v1143
      %v1145 = vpop.f32.mrb[0].mxu0
      %1146 = vmatprep.mubr.f32.mxu0 0.0
      %1147 = vmatmul.mubr.f32.gmra.mrb[0].mxu0 %v899
      %v1148 = vpop.f32.mrb[0].mxu0
      %v1149 = vadd.f32 %v871, %v1148
      %v1150 = vpop.f32.mrb[0].mxu0
      %1151 = vmatprep.mubr.f32.mxu0 0.0
      %1152 = vmatmul.mubr.f32.gmra.mrb[0].mxu0 %v902
      %v1153 = vpop.f32.mrb[0].mxu0
      %v1154 = vadd.f32 %v871, %v1153
      %v1155 = vpop.f32.mrb[0].mxu0
      %1156 = vmatprep.mubr.f32.mxu0 0.0
      %1157 = vmatmul.mubr.f32.gmra.mrb[0].mxu0 %v905
      %v1158 = vpop.f32.mrb[0].mxu0
      %v1159 = vadd.f32 %v871, %v1158
      %v1160 = vpop.f32.mrb[0].mxu0
      %1161 = vmatprep.mubr.f32.mxu0 0.0
      %1162 = vmatmul.mubr.f32.gmra.mrb[0].mxu0 %v908
      %v1163 = vpop.f32.mrb[0].mxu0
      %v1164 = vadd.f32 %v871, %v1163
      %v1165 = vpop.f32.mrb[0].mxu0
      %1166 = vmatprep.mubr.f32.mxu0 0.0
      %1167 = vmatmul.mubr.f32.gmra.mrb[0].mxu0 %v911
      %v1168 = vpop.f32.mrb[0].mxu0
      %v1169 = vadd.f32 %v871, %v1168
      %v1170 = vpop.f32.mrb[0].mxu0
      %1171 = vmatprep.mubr.f32.mxu0 0.0
      %1172 = vmatmul.mubr.f32.gmra.mrb[0].mxu0 %v914
      %v1173 = vpop.f32.mrb[0].mxu0
      %v1174 = vadd.f32 %v871, %v1173
      %v1175 = vpop.f32.mrb[0].mxu0
      %1176 = vmatprep.mubr.f32.mxu0 0.0
      %1177 = vmatmul.mubr.f32.gmra.mrb[0].mxu0 %v917
      %v1178 = vpop.f32.mrb[0].mxu0
      %v1179 = vadd.f32 %v871, %v1178
      %v1180 = vpop.f32.mrb[0].mxu0
      %1181 = vmatprep.mubr.f32.mxu0 0.0
      %1182 = vmatmul.mubr.f32.gmra.mrb[0].mxu0 %v920
      %v1183 = vpop.f32.mrb[0].mxu0
      %v1184 = vadd.f32 %v871, %v1183
      %v1185 = vpop.f32.mrb[0].mxu0
      %1186 = vmatprep.mubr.f32.mxu0 0.0
      %1187 = vmatmul.mubr.f32.gmra.mrb[0].mxu0 %v923
      %v1188 = vpop.f32.mrb[0].mxu0
      %v1189 = vadd.f32 %v871, %v1188
      %v1190 = vpop.f32.mrb[0].mxu0
      %1191 = vmatprep.mubr.f32.mxu0 0.0
      %1192 = vmatmul.mubr.f32.gmra.mrb[0].mxu0 %v926
      %v1193 = vpop.f32.mrb[0].mxu0
      %v1194 = vadd.f32 %v871, %v1193
      %v1195 = vpop.f32.mrb[0].mxu0
      %1196 = vmatprep.mubr.f32.mxu0 0.0
      %1197 = vmatmul.mubr.f32.gmra.mrb[0].mxu0 %v929
      %v1198 = vpop.f32.mrb[0].mxu0
      %v1199 = vadd.f32 %v871, %v1198
      %v1200 = vpop.f32.mrb[0].mxu0
      %1201 = vmatprep.mubr.f32.mxu0 0.0
      %1202 = vmatmul.mubr.f32.gmra.mrb[0].mxu0 %v932
      %v1203 = vpop.f32.mrb[0].mxu0
      %v1204 = vadd.f32 %v871, %v1203
      %v1205 = vpop.f32.mrb[0].mxu0
      %1206 = vmatprep.mubr.f32.mxu0 0.0
      %1207 = vmatmul.mubr.f32.gmra.mrb[0].mxu0 %v935
      %v1208 = vpop.f32.mrb[0].mxu0
      %v1209 = vadd.f32 %v871, %v1208
      %v1210 = vpop.f32.mrb[0].mxu0
      %1211 = vmatprep.mubr.f32.mxu0 0.0
      %1212 = vmatmul.mubr.f32.gmra.mrb[0].mxu0 %v938
      %v1213 = vpop.f32.mrb[0].mxu0
      %v1214 = vadd.f32 %v871, %v1213
      %v1215 = vpop.f32.mrb[0].mxu0
      %1216 = vmatprep.mubr.f32.mxu0 0.0
      %1217 = vmatmul.mubr.f32.gmra.mrb[0].mxu0 %v941
      %v1218 = vpop.f32.mrb[0].mxu0
      %v1219 = vadd.f32 %v871, %v1218
      %v1220 = vpop.f32.mrb[0].mxu0
      %1221 = vmatprep.mubr.f32.mxu0 0.0
      %1222 = vmatmul.mubr.f32.gmra.mrb[0].mxu0 %v944
      %v1223 = vpop.f32.mrb[0].mxu0
      %v1224 = vadd.f32 %v871, %v1223
      %v1225 = vpop.f32.mrb[0].mxu0
      %1226 = vmatprep.mubr.f32.mxu0 0.0
      %1227 = vmatmul.mubr.f32.gmra.mrb[0].mxu0 %v947
      %v1228 = vpop.f32.mrb[0].mxu0
      %v1229 = vadd.f32 %v871, %v1228
      %v1230 = vpop.f32.mrb[0].mxu0
      %1231 = vmatprep.mubr.f32.mxu0 0.0
      %1232 = vmatmul.mubr.f32.gmra.mrb[0].mxu0 %v950
      %v1233 = vpop.f32.mrb[0].mxu0
      %v1234 = vadd.f32 %v871, %v1233
      %v1235 = vpop.f32.mrb[0].mxu0
      %1236 = vmatprep.mubr.f32.mxu0 0.0
      %1237 = vmatmul.mubr.f32.gmra.mrb[0].mxu0 %v953
      %v1238 = vpop.f32.mrb[0].mxu0
      %v1239 = vadd.f32 %v871, %v1238
      %v1240 = vpop.f32.mrb[0].mxu0
      %1241 = vmatprep.mubr.f32.mxu0 0.0
      %1242 = vmatmul.mubr.f32.gmra.mrb[0].mxu0 %v956
      %v1243 = vpop.f32.mrb[0].mxu0
      %v1244 = vadd.f32 %v871, %v1243
      %v1245 = vpop.f32.mrb[0].mxu0
      %1246 = vmatprep.mubr.f32.mxu0 0.0
      %1247 = vmatmul.mubr.f32.gmra.mrb[0].mxu0 %v959
      %v1248 = vpop.f32.mrb[0].mxu0
      %v1249 = vadd.f32 %v871, %v1248
      %v1250 = vpop.f32.mrb[0].mxu0
      %1251 = vmatprep.mubr.f32.mxu0 0.0
      %1252 = vmatmul.mubr.f32.gmra.mrb[0].mxu0 %v962
      %v1253 = vpop.f32.mrb[0].mxu0
      %v1254 = vadd.f32 %v871, %v1253
      %v1255 = vpop.f32.mrb[0].mxu0
      %1256 = vmatprep.mubr.f32.mxu0 0.0
      %1257 = vmatmul.mubr.f32.gmra.mrb[0].mxu0 %v965
      %v1258 = vpop.f32.mrb[0].mxu0
      %v1259 = vadd.f32 %v871, %v1258
      %v1260 = vpop.f32.mrb[0].mxu0
      %1261 = vmatprep.mubr.f32.mxu0 0.0
      %1262 = vmatmul.mubr.f32.gmra.mrb[0].mxu0 %v968
      %v1263 = vpop.f32.mrb[0].mxu0
      %v1264 = vadd.f32 %v871, %v1263
      %v1265 = vpop.f32.mrb[0].mxu0
      %1266 = vmatprep.mubr.f32.mxu0 0.0
      %1267 = vmatmul.mubr.f32.gmra.mrb[0].mxu0 %v971
      %v1268 = vpop.f32.mrb[0].mxu0
      %v1269 = vadd.f32 %v871, %v1268
      %v1270 = vpop.f32.mrb[0].mxu0
      %1271 = vmatprep.mubr.f32.mxu0 0.0
      %1272 = vmatmul.mubr.f32.gmra.mrb[0].mxu0 %v974
      %v1273 = vpop.f32.mrb[0].mxu0
      %v1274 = vadd.f32 %v871, %v1273
      %v1275 = vpop.f32.mrb[0].mxu0
      %1276 = vmatprep.mubr.f32.mxu0 0.0
      %1277 = vmatmul.mubr.f32.gmra.mrb[0].mxu0 %v977
      %v1278 = vpop.f32.mrb[0].mxu0
      %v1279 = vadd.f32 %v871, %v1278
      %v1280 = vpop.f32.mrb[0].mxu0
      %1281 = vmatprep.mubr.f32.mxu0 0.0
      %1282 = vmatmul.mubr.f32.gmra.mrb[0].mxu0 %v980
      %v1283 = vpop.f32.mrb[0].mxu0
      %v1284 = vadd.f32 %v871, %v1283
      %v1285 = vpop.f32.mrb[0].mxu0
      %1286 = vmatprep.mubr.f32.mxu0 0.0
      %1287 = vmatmul.mubr.f32.gmra.mrb[0].mxu0 %v983
      %v1288 = vpop.f32.mrb[0].mxu0
      %v1289 = vadd.f32 %v871, %v1288
      %v1290 = vpop.f32.mrb[0].mxu0
      %1291 = vmatprep.mubr.f32.mxu0 0.0
      %1292 = vmatmul.mubr.f32.gmra.mrb[0].mxu0 %v986
      %v1293 = vpop.f32.mrb[0].mxu0
      %v1294 = vadd.f32 %v871, %v1293
      %v1295 = vpop.f32.mrb[0].mxu0
      %1296 = vmatprep.mubr.f32.mxu0 0.0
      %1297 = vmatmul.mubr.f32.gmra.mrb[0].mxu0 %v989
      %v1298 = vpop.f32.mrb[0].mxu0
      %v1299 = vadd.f32 %v871, %v1298
      %v1300 = vpop.f32.mrb[0].mxu0
      %1301 = vmatprep.mubr.f32.mxu0 0.0
      %1302 = vmatmul.mubr.f32.gmra.mrb[0].mxu0 %v992
      %v1303 = vpop.f32.mrb[0].mxu0
      %v1304 = vadd.f32 %v871, %v1303
      %v1305 = vpop.f32.mrb[0].mxu0
      %1306 = vmatprep.mubr.f32.mxu0 0.0
      %1307 = vmatmul.mubr.f32.gmra.mrb[0].mxu0 %v995
      %v1308 = vpop.f32.mrb[0].mxu0
      %v1309 = vadd.f32 %v871, %v1308
      %v1310 = vpop.f32.mrb[0].mxu0
      %1311 = vmatprep.mubr.f32.mxu0 0.0
      %1312 = vmatmul.mubr.f32.gmra.mrb[0].mxu0 %v998
      %v1313 = vpop.f32.mrb[0].mxu0
      %v1314 = vadd.f32 %v871, %v1313
      %v1315 = vpop.f32.mrb[0].mxu0
      %1316 = vmatprep.mubr.f32.mxu0 0.0
      %1317 = vmatmul.mubr.f32.gmra.mrb[0].mxu0 %v1001
      %v1318 = vpop.f32.mrb[0].mxu0
      %v1319 = vadd.f32 %v871, %v1318
      %v1320 = vpop.f32.mrb[0].mxu0
      %1321 = vmatprep.mubr.f32.mxu0 0.0
      %1322 = vmatmul.mubr.f32.gmra.mrb[0].mxu0 %v1004
      %v1323 = vpop.f32.mrb[0].mxu0
      %v1324 = vadd.f32 %v871, %v1323
      %v1325 = vpop.f32.mrb[0].mxu0
      %1326 = vmatprep.mubr.f32.mxu0 0.0
      %1327 = vmatmul.mubr.f32.gmra.mrb[0].mxu0 %v1007
      %v1328 = vpop.f32.mrb[0].mxu0
      %v1329 = vadd.f32 %v871, %v1328
      %v1330 = vpop.f32.mrb[0].mxu0
      %1331 = vmatprep.mubr.f32.mxu0 0.0
      %1332 = vmatmul.mubr.f32.gmra.mrb[0].mxu0 %v1010
      %v1333 = vpop.f32.mrb[0].mxu0
      %v1334 = vadd.f32 %v871, %v1333
      %v1335 = vpop.f32.mrb[0].mxu0
      %1336 = vmatprep.mubr.f32.mxu0 0.0
      %1337 = vmatmul.mubr.f32.gmra.mrb[0].mxu0 %v1013
      %v1338 = vpop.f32.mrb[0].mxu0
      %v1339 = vadd.f32 %v871, %v1338
      %v1340 = vpop.f32.mrb[0].mxu0
      %1341 = vmatprep.mubr.f32.mxu0 0.0
      %1342 = vmatmul.mubr.f32.gmra.mrb[0].mxu0 %v1016
      %v1343 = vpop.f32.mrb[0].mxu0
      %v1344 = vadd.f32 %v871, %v1343
      %v1345 = vpop.f32.mrb[0].mxu0
      %1346 = vmatprep.mubr.f32.mxu0 0.0
      %1347 = vmatmul.mubr.f32.gmra.mrb[0].mxu0 %v1019
      %v1348 = vpop.f32.mrb[0].mxu0
      %v1349 = vadd.f32 %v871, %v1348
      %v1350 = vpop.f32.mrb[0].mxu0
      %1351 = vmatprep.mubr.f32.mxu0 0.0
      %1352 = vmatmul.mubr.f32.gmra.mrb[0].mxu0 %v1022
      %v1353 = vpop.f32.mrb[0].mxu0
      %v1354 = vadd.f32 %v871, %v1353
      %v1355 = vpop.f32.mrb[0].mxu0
      %1356 = vmatprep.mubr.f32.mxu0 0.0
      %1357 = vmatmul.mubr.f32.gmra.mrb[0].mxu0 %v1025
      %v1358 = vpop.f32.mrb[0].mxu0
      %v1359 = vadd.f32 %v871, %v1358
      %v1360 = vpop.f32.mrb[0].mxu0
      %1361 = vmatprep.mubr.f32.mxu0 0.0
      %1362 = vmatmul.mubr.f32.gmra.mrb[0].mxu0 %v1028
      %v1363 = vpop.f32.mrb[0].mxu0
      %v1364 = vadd.f32 %v871, %v1363
      %v1365 = vpop.f32.mrb[0].mxu0
      %1366 = vmatprep.mubr.f32.mxu0 0.0
      %1367 = vmatmul.mubr.f32.gmra.mrb[0].mxu0 %v1031
      %v1368 = vpop.f32.mrb[0].mxu0
      %v1369 = vadd.f32 %v871, %v1368
      %v1370 = vpop.f32.mrb[0].mxu0
      %1371 = vmatprep.mubr.f32.mxu0 0.0
      %1372 = vmatmul.mubr.f32.gmra.mrb[0].mxu0 %v1034
      %v1373 = vpop.f32.mrb[0].mxu0
      %v1374 = vadd.f32 %v871, %v1373
      %v1375 = vpop.f32.mrb[0].mxu0
      %1376 = vmatprep.mubr.f32.mxu0 0.0
      %1377 = vmatmul.mubr.f32.gmra.mrb[0].mxu0 %v1037
      %v1378 = vpop.f32.mrb[0].mxu0
      %v1379 = vadd.f32 %v871, %v1378
      %v1380 = vpop.f32.mrb[0].mxu0
      %1381 = vmatprep.mubr.f32.mxu0 0.0
      %1382 = vmatmul.mubr.f32.gmra.mrb[0].mxu0 %v1040
      %v1383 = vpop.f32.mrb[0].mxu0
      %v1384 = vadd.f32 %v871, %v1383
      %v1385 = vpop.f32.mrb[0].mxu0
      %1386 = vdwg.mxu0
      %vm1387 = vcmask 15360
      %1388 = vst.msk [vmem:[%s226] sm:$0xff] %vm1387, %v1109
      %1389 = vst.msk [vmem:[%s226 + $0x8] sm:$0xff] %vm1387, %v1114
      %1390 = vst.msk [vmem:[%s226 + $0x10] sm:$0xff] %vm1387, %v1119
      %1391 = vst.msk [vmem:[%s226 + $0x18] sm:$0xff] %vm1387, %v1124
      %1392 = vst.msk [vmem:[%s226 + $0x20] sm:$0xff] %vm1387, %v1129
      %1393 = vst.msk [vmem:[%s226 + $0x28] sm:$0xff] %vm1387, %v1134
      %1394 = vst.msk [vmem:[%s226 + $0x30] sm:$0xff] %vm1387, %v1139
      %1395 = vst.msk [vmem:[%s226 + $0x38] sm:$0xff] %vm1387, %v1144
      %1396 = vst.msk [vmem:[%s226 + $0x40] sm:$0xff] %vm1387, %v1149
      %1397 = vst.msk [vmem:[%s226 + $0x48] sm:$0xff] %vm1387, %v1154
      %1398 = vst.msk [vmem:[%s226 + $0x50] sm:$0xff] %vm1387, %v1159
      %1399 = vst.msk [vmem:[%s226 + $0x58] sm:$0xff] %vm1387, %v1164
      %1400 = vst.msk [vmem:[%s226 + $0x60] sm:$0xff] %vm1387, %v1169
      %1401 = vst.msk [vmem:[%s226 + $0x68] sm:$0xff] %vm1387, %v1174
      %1402 = vst.msk [vmem:[%s226 + $0x70] sm:$0xff] %vm1387, %v1179
      %1403 = vst.msk [vmem:[%s226 + $0x78] sm:$0xff] %vm1387, %v1184
      %1404 = vst.msk [vmem:[%s226 + $0x80] sm:$0xff] %vm1387, %v1189
      %1405 = vst.msk [vmem:[%s226 + $0x88] sm:$0xff] %vm1387, %v1194
      %1406 = vst.msk [vmem:[%s226 + $0x90] sm:$0xff] %vm1387, %v1199
      %1407 = vst.msk [vmem:[%s226 + $0x98] sm:$0xff] %vm1387, %v1204
      %1408 = vst.msk [vmem:[%s226 + $0xa0] sm:$0xff] %vm1387, %v1209
      %1409 = vst.msk [vmem:[%s226 + $0xa8] sm:$0xff] %vm1387, %v1214
      %1410 = vst.msk [vmem:[%s226 + $0xb0] sm:$0xff] %vm1387, %v1219
      %1411 = vst.msk [vmem:[%s226 + $0xb8] sm:$0xff] %vm1387, %v1224
      %1412 = vst.msk [vmem:[%s226 + $0xc0] sm:$0xff] %vm1387, %v1229
      %1413 = vst.msk [vmem:[%s226 + $0xc8] sm:$0xff] %vm1387, %v1234
      %1414 = vst.msk [vmem:[%s226 + $0xd0] sm:$0xff] %vm1387, %v1239
      %1415 = vst.msk [vmem:[%s226 + $0xd8] sm:$0xff] %vm1387, %v1244
      %1416 = vst.msk [vmem:[%s226 + $0xe0] sm:$0xff] %vm1387, %v1249
      %1417 = vst.msk [vmem:[%s226 + $0xe8] sm:$0xff] %vm1387, %v1254
      %1418 = vst.msk [vmem:[%s226 + $0xf0] sm:$0xff] %vm1387, %v1259
      %1419 = vst.msk [vmem:[%s226 + $0xf8] sm:$0xff] %vm1387, %v1264
      %1420 = vst.msk [vmem:[%s226 + $0x100] sm:$0xff] %vm1387, %v1269
      %1421 = vst.msk [vmem:[%s226 + $0x108] sm:$0xff] %vm1387, %v1274
      %1422 = vst.msk [vmem:[%s226 + $0x110] sm:$0xff] %vm1387, %v1279
      %1423 = vst.msk [vmem:[%s226 + $0x118] sm:$0xff] %vm1387, %v1284
      %1424 = vst.msk [vmem:[%s226 + $0x120] sm:$0xff] %vm1387, %v1289
      %1425 = vst.msk [vmem:[%s226 + $0x128] sm:$0xff] %vm1387, %v1294
      %1426 = vst.msk [vmem:[%s226 + $0x130] sm:$0xff] %vm1387, %v1299
      %1427 = vst.msk [vmem:[%s226 + $0x138] sm:$0xff] %vm1387, %v1304
      %1428 = vst.msk [vmem:[%s226 + $0x140] sm:$0xff] %vm1387, %v1309
      %1429 = vst.msk [vmem:[%s226 + $0x148] sm:$0xff] %vm1387, %v1314
      %1430 = vst.msk [vmem:[%s226 + $0x150] sm:$0xff] %vm1387, %v1319
      %1431 = vst.msk [vmem:[%s226 + $0x158] sm:$0xff] %vm1387, %v1324
      %1432 = vst.msk [vmem:[%s226 + $0x160] sm:$0xff] %vm1387, %v1329
      %1433 = vst.msk [vmem:[%s226 + $0x168] sm:$0xff] %vm1387, %v1334
      %1434 = vst.msk [vmem:[%s226 + $0x170] sm:$0xff] %vm1387, %v1339
      %1435 = vst.msk [vmem:[%s226 + $0x178] sm:$0xff] %vm1387, %v1344
      %1436 = vst.msk [vmem:[%s226 + $0x180] sm:$0xff] %vm1387, %v1349
      %1437 = vst.msk [vmem:[%s226 + $0x188] sm:$0xff] %vm1387, %v1354
      %1438 = vst.msk [vmem:[%s226 + $0x190] sm:$0xff] %vm1387, %v1359
      %1439 = vst.msk [vmem:[%s226 + $0x198] sm:$0xff] %vm1387, %v1364
      %1440 = vst.msk [vmem:[%s226 + $0x1a0] sm:$0xff] %vm1387, %v1369
      %1441 = vst.msk [vmem:[%s226 + $0x1a8] sm:$0xff] %vm1387, %v1374
      %1442 = vst.msk [vmem:[%s226 + $0x1b0] sm:$0xff] %vm1387, %v1379
      %1443 = vst.msk [vmem:[%s226 + $0x1b8] sm:$0xff] %vm1387, %v1384
      %s1444 = smul.u32 56, %s16
      %p1445 = scmp.lt.s32.totalorder %s1444, 111
      %s1446 = scalar_select %p1445, %s1444, 111
      %s1447 = smul.addr %s1446, 8
      %s1448 = scalar_lea.vmem %s5, %s1447
      // Predicated region
      $region41: #{_mlp_forward.1} parent=39 // pred_check
        %p1449 = pneg %p144
      $region42: #{_mlp_forward.1} parent=39 // pred_check_branch
        %1451 = sbr.rel (%p1449) target = $region44
      $region43: #{_mlp_forward.1} parent=39 // pred_region
        %s1452 = smul.u32 56, %s16
      $region44: #{_mlp_forward.1} parent=39 // pred_fallthru
        _
    $region40: #{_mlp_forward.1} parent=5 // pred_fallthru
      _
    %p1453 = scmp.le.s32.totalorder 2, %s11
    // Predicated region
    $region45: #{_mlp_forward.1} parent=5 // pred_check
      %p1454 = pneg %p1453
    $region46: #{_mlp_forward.1} parent=5 // pred_check_branch
      %1456 = sbr.rel (%p1454) target = $region48
    $region47: #{_mlp_forward.1} parent=5 // pred_region
      %s1457 = ssub.s32 %s11, 2
      // Predicated region
      $region49: #{_mlp_forward.1} parent=47 // pred_check
        %p1458 = pneg %p150
      $region50: #{_mlp_forward.1} parent=47 // pred_check_branch
        %1460 = sbr.rel (%p1458) target = $region52
      $region51: #{_mlp_forward.1} parent=47 // pred_region
        %s1461 = smul.u32 56, %s17
        %p1462 = scmp.lt.s32.totalorder %s1461, 111
        %s1463 = scalar_select %p1462, %s1461, 111
        %s1464 = smul.addr %s1463, 8
        %s1465 = scalar_lea.vmem %s5, %s1464
      $region52: #{_mlp_forward.1} parent=47 // pred_fallthru
        _
    $region48: #{_mlp_forward.1} parent=5 // pred_fallthru
      _
  $region6: #{_mlp_forward.1} parent=0 // loop_footer
    %s15 = sadd.s32 1, %s11
  $region7: #{_mlp_forward.1} parent=0 // loop_footer_branch
    %10 = sbr.rel target = $region3
  $region8: #{_mlp_forward.1} parent=0 // loop_exit
    _

</llo_original>
